<compile_context>
chip_gen: v5e
topology: v5e:2x2
jax: 0.10.0
libtpu: 0.0.40
codegen_flags: <defaults>
</compile_context>

<pallas_src>
import functools

import jax
import jax.numpy as jnp
from jax.experimental import pallas as pl
from jax.experimental.pallas import tpu as pltpu


def attention_kernel(hid_ref, enc_ref, whT_ref, weT_ref, b_ref, coe_ref,
                     out_ref, score_ref, *, seq_len):
    # hid_ref:   (TB, H)           hidden block (compute dtype)
    # enc_ref:   (TB, St, H)       contiguous encoder block (compute dtype)
    # whT/weT:   (H, H)            W[:, :H].T / W[:, H:].T (grid-resident, compute dtype)
    # b_ref:     (1, H) f32, coe_ref: (1, H) f32
    # out_ref:   (TB, S_pad) f32   resident across the S-tile grid axis
    # score_ref: (TB, S_pad) f32   VMEM scratch holding raw scores
    i_s = pl.program_id(1)
    TB, St, H = enc_ref.shape
    S_pad = score_ref.shape[1]

    # Hidden half of the Linear + bias: one (TB,H)x(H,H) MXU push, f32 accumulate.
    # Recomputed per S tile (all operands grid-resident; ~1/St of the encoder flops).
    hb = jnp.dot(hid_ref[...], whT_ref[...],
                 preferred_element_type=jnp.float32) + b_ref[...]            # (TB, H) f32

    # Encoder half for this S tile: a single contiguous (TB*St, H) x (H, H) MXU op.
    # The (TB, St) collapse is a free view because St is a multiple of 128 (>= 8).
    e2 = enc_ref[...].reshape(TB * St, H)
    pre = jnp.dot(e2, weT_ref[...],
                  preferred_element_type=jnp.float32).reshape(TB, St, H)     # f32

    # tanh in the compute dtype: bf16 hits the bf16 EUP path on v6e/v7x (v5e upcasts).
    t = jnp.tanh((pre + hb[:, None, :]).astype(enc_ref.dtype))               # (TB, St, H)

    # Score: VPU broadcast-multiply + lane (XLU) reduction in f32 (promotion against
    # the f32 coe), not an N=1 MXU matmul behind the big one in the result FIFO.
    sc = jnp.sum(t * coe_ref[...].reshape(1, 1, H), axis=-1)                 # (TB, St) f32

    start = pl.multiple_of(i_s * St, St)
    score_ref[:, pl.ds(start, St)] = sc

    # Softmax over the full (resident) score row once the last S tile is in.
    @pl.when(i_s == pl.num_programs(1) - 1)
    def _():
        full = score_ref[...]                                                # (TB, S_pad)
        if S_pad != seq_len:  # static: mask the zero-padded tail out of the softmax
            col = jax.lax.broadcasted_iota(jnp.int32, full.shape, 1)
            full = jnp.where(col < seq_len, full, -jnp.inf)
        m = jnp.max(full, axis=-1, keepdims=True)                            # (TB, 1)
        ex = jnp.exp(full - m)                                               # f32 exp
        denom = jnp.sum(ex, axis=-1, keepdims=True)                          # (TB, 1)
        inv = 1.0 / denom                                                    # exact, only TB values
        out_ref[...] = (ex * inv).astype(out_ref.dtype)                      # lane-dense store


def _pick_tb(B):
    """Largest multiple-of-8 batch block dividing B that still leaves >=2 grid steps
    on the (parallel) batch axis, so both v7x TensorCores get work; falls back to the
    whole batch for small / non-multiple-of-8 B."""
    if B % 8 != 0:
        return B
    for t in (64, 32, 16, 8):
        if t <= B and B % t == 0 and B // t >= 2:
            return t
    return B


def _pick_s_tile(S_pad, tb, H, itemsize, budget_bytes=4 * 1024 * 1024):
    """Largest multiple of 128 dividing S_pad whose (tb, S_tile, H) encoder block stays
    within a per-buffer budget (double-buffered by the pipeline) — bounded for v7x's
    64 MiB VMEM as well as v5e/v6e's 128 MiB."""
    best = 128
    t = 128
    while t <= S_pad:
        if S_pad % t == 0 and tb * t * H * itemsize <= budget_bytes:
            best = t
        t += 128
    return best


def attention_forward(hidden, encoder_outputs, w, bias, coe,
                      compute_dtype=jnp.bfloat16):
    """hidden: (B,H) f32; encoder_outputs: (S,B,H) f32; w: (H,2H); bias, coe: (H,).
    Returns the softmax attention, shape (B, 1, S), f32 (matches the PyTorch module).

    compute_dtype controls the encoder/hidden/weight DMA, the two MXU matmuls and the
    tanh (accumulation, score and softmax stay f32). bf16 (default) halves HBM traffic
    on this HBM-bound kernel; pass jnp.float32 for an exact-precision run."""
    S, B, H = encoder_outputs.shape
    assert hidden.shape == (B, H)
    assert compute_dtype in (jnp.float32, jnp.bfloat16)

    # ---- one-time layout plumbing (hoist outside the per-decoder-step call) ----
    # (S,B,H) -> (B,S,H): contiguous encoder DMA blocks, no in-kernel score transpose,
    # lane-dense output. S is padded to a multiple of 128 for unmasked stores.
    enc = jnp.transpose(encoder_outputs, (1, 0, 2))                   # (B, S, H)
    S_pad = -(-S // 128) * 128
    if S_pad != S:
        enc = jnp.pad(enc, ((0, 0), (0, S_pad - S), (0, 0)))
    enc = enc.astype(compute_dtype)
    hid = hidden.astype(compute_dtype)
    whT = jnp.transpose(w[:, :H]).astype(compute_dtype)               # acts on hidden
    weT = jnp.transpose(w[:, H:]).astype(compute_dtype)               # acts on encoder
    bias2 = bias[None, :].astype(jnp.float32)
    coe2 = coe[None, :].astype(jnp.float32)

    tb = _pick_tb(B)
    nb = B // tb
    st = _pick_s_tile(S_pad, tb, H, jnp.dtype(compute_dtype).itemsize)
    ns = S_pad // st

    kernel = functools.partial(attention_kernel, seq_len=S)

    out2d = pl.pallas_call(
        kernel,
        out_shape=jax.ShapeDtypeStruct((B, S_pad), jnp.float32),
        grid_spec=pltpu.PrefetchScalarGridSpec(
            num_scalar_prefetch=0,
            grid=(nb, ns),                                   # batch blocks x S tiles (S axis last)
            in_specs=[
                pl.BlockSpec((tb, H), lambda i, s: (i, 0)),         # hidden block
                pl.BlockSpec((tb, st, H), lambda i, s: (i, s, 0)),  # contiguous encoder block
                pl.BlockSpec((H, H), lambda i, s: (0, 0)),          # W[:, :H].T (grid-resident)
                pl.BlockSpec((H, H), lambda i, s: (0, 0)),          # W[:, H:].T (grid-resident)
                pl.BlockSpec((1, H), lambda i, s: (0, 0)),          # bias (f32)
                pl.BlockSpec((1, H), lambda i, s: (0, 0)),          # attn_weight_coe (f32)
            ],
            out_specs=pl.BlockSpec((tb, S_pad), lambda i, s: (i, 0)),  # resident across S tiles
            scratch_shapes=[pltpu.VMEM((tb, S_pad), jnp.float32)],     # raw scores
        ),
        compiler_params=pltpu.CompilerParams(
            dimension_semantics=("parallel", "arbitrary"),   # batch axis megacore-shardable
            vmem_limit_bytes=48 * 1024 * 1024,               # > v5e/v6e defaults, < v7x 64 MiB
        ),
    )(hid, enc, whT, weT, bias2, coe2)

    return out2d[:, None, :S]    # (B, 1, S) — free slice/reshape outside the kernel


def attention_reference(hidden, encoder_outputs, w, bias, coe):
    """Pure-JAX mirror of the PyTorch forward, for verification."""
    S, B, H = encoder_outputs.shape
    atten_hidden = jnp.broadcast_to(hidden[None], (S, B, H)).transpose(1, 0, 2)  # (B,S,H)
    enc = encoder_outputs.transpose(1, 0, 2)                                     # (B,S,H)
    x = jnp.concatenate([atten_hidden, enc], axis=2)                             # (B,S,2H)
    attn = jnp.tanh(x @ w.T + bias).transpose(0, 2, 1)                           # (B,H,S)
    attention = jnp.einsum('h,bhs->bs', coe, attn)                               # (B,S)
    return jax.nn.softmax(attention, axis=1)[:, None, :]                         # (B,1,S)


if __name__ == "__main__":
    B, S, H = 2, 8, 32

    key = jax.random.PRNGKey(0)
    k_hid, k_enc, k_w, k_b, k_coe = jax.random.split(key, 5)

    hidden = jax.random.normal(k_hid, (B, H), dtype=jnp.float32)
    encoder_outputs = jax.random.normal(k_enc, (S, B, H), dtype=jnp.float32)

    # Deterministic parameter init (shapes from nn.Linear(2H, H) and Parameter(rand(H))).
    lim = 1.0 / (2 * H) ** 0.5
    w = jax.random.uniform(k_w, (H, 2 * H), jnp.float32, -lim, lim)
    bias = jax.random.uniform(k_b, (H,), jnp.float32, -lim, lim)
    coe = jax.random.uniform(k_coe, (H,), jnp.float32)

    ref = attention_reference(hidden, encoder_outputs, w, bias, coe)

    # Exact-precision path (f32 everywhere): tight check vs the pure-JAX reference.
    out_f32 = jax.block_until_ready(
        attention_forward(hidden, encoder_outputs, w, bias, coe,
                          compute_dtype=jnp.float32))
    assert out_f32.shape == (B, 1, S)
    assert jnp.allclose(out_f32, ref, atol=1e-5, rtol=1e-5), "f32 kernel mismatch vs reference"

    # Performance path (bf16 DMA / MXU / tanh, f32 accumulate + softmax): loose check.
    out_bf16 = jax.block_until_ready(
        attention_forward(hidden, encoder_outputs, w, bias, coe,
                          compute_dtype=jnp.bfloat16))
    assert out_bf16.shape == (B, 1, S)
    assert jnp.allclose(out_bf16, ref, atol=5e-2, rtol=5e-2), "bf16 kernel mismatch vs reference"

    print("KERNEL_OK")
</pallas_src>

<mosaic_0001>
module attributes {stable_mosaic.version = 11 : i64} {
  func.func @attention_kernel(%arg0: i32, %arg1: i32, %arg2: memref<2x32xf32, #tpu.memory_space<vmem>>, %arg3: memref<2x128x32xf32, #tpu.memory_space<vmem>>, %arg4: memref<32x32xf32, #tpu.memory_space<vmem>>, %arg5: memref<32x32xf32, #tpu.memory_space<vmem>>, %arg6: memref<1x32xf32, #tpu.memory_space<vmem>>, %arg7: memref<1x32xf32, #tpu.memory_space<vmem>>, %arg8: memref<2x128xf32, #tpu.memory_space<vmem>>, %arg9: memref<2x128xf32, #tpu.memory_space<vmem>>) attributes {dimension_semantics = [#tpu.dimension_semantics<parallel>, #tpu.dimension_semantics<arbitrary>], iteration_bounds = array<i64: 1, 1>, scalar_prefetch = 0 : i64, scratch_operands = 1 : i64, tpu.core_type = #tpu.core_type<tc>, window_params = [{transform_indices = @transform_0, window_bounds = array<i64: 2, 32>}, {transform_indices = @transform_1, window_bounds = array<i64: 2, 128, 32>}, {pipeline_mode = #tpu.pipeline_mode<synchronous>, transform_indices = @transform_2, window_bounds = array<i64: 32, 32>}, {pipeline_mode = #tpu.pipeline_mode<synchronous>, transform_indices = @transform_3, window_bounds = array<i64: 32, 32>}, {pipeline_mode = #tpu.pipeline_mode<synchronous>, transform_indices = @transform_4, window_bounds = array<i64: 1, 32>}, {pipeline_mode = #tpu.pipeline_mode<synchronous>, transform_indices = @transform_5, window_bounds = array<i64: 1, 32>}, {transform_indices = @transform_6, window_bounds = array<i64: 2, 128>}]} {
    %c0 = arith.constant 0 : index
    %c0_0 = arith.constant 0 : index
    %0 = vector.load %arg2[%c0, %c0_0] : memref<2x32xf32, #tpu.memory_space<vmem>>, vector<2x32xf32>
    %c0_1 = arith.constant 0 : index
    %c0_2 = arith.constant 0 : index
    %1 = vector.load %arg4[%c0_1, %c0_2] : memref<32x32xf32, #tpu.memory_space<vmem>>, vector<32x32xf32>
    %cst = arith.constant dense<0.000000e+00> : vector<2x32xf32>
    %2 = tpu.matmul %0, %1, %cst {dimension_numbers = #tpu.dot_dimension_numbers<[1], [0], [0], [1], [0, 0, 1, 1], [], []>} : vector<2x32xf32>, vector<32x32xf32>, vector<2x32xf32> -> vector<2x32xf32>
    %c0_3 = arith.constant 0 : index
    %c0_4 = arith.constant 0 : index
    %3 = vector.load %arg6[%c0_3, %c0_4] : memref<1x32xf32, #tpu.memory_space<vmem>>, vector<1x32xf32>
    %4 = vector.broadcast %3 : vector<1x32xf32> to vector<2x32xf32>
    %5 = arith.addf %2, %4 : vector<2x32xf32>
    %c0_5 = arith.constant 0 : index
    %c0_6 = arith.constant 0 : index
    %c0_7 = arith.constant 0 : index
    %6 = vector.load %arg3[%c0_5, %c0_6, %c0_7] : memref<2x128x32xf32, #tpu.memory_space<vmem>>, vector<2x128x32xf32>
    %7 = vector.shape_cast %6 : vector<2x128x32xf32> to vector<256x32xf32>
    %c0_8 = arith.constant 0 : index
    %c0_9 = arith.constant 0 : index
    %8 = vector.load %arg5[%c0_8, %c0_9] : memref<32x32xf32, #tpu.memory_space<vmem>>, vector<32x32xf32>
    %cst_10 = arith.constant dense<0.000000e+00> : vector<256x32xf32>
    %9 = tpu.matmul %7, %8, %cst_10 {dimension_numbers = #tpu.dot_dimension_numbers<[1], [0], [0], [1], [0, 0, 1, 1], [], []>} : vector<256x32xf32>, vector<32x32xf32>, vector<256x32xf32> -> vector<256x32xf32>
    %10 = vector.shape_cast %9 : vector<256x32xf32> to vector<2x128x32xf32>
    %11 = vector.shape_cast %5 : vector<2x32xf32> to vector<2x1x32xf32>
    %12 = vector.broadcast %11 : vector<2x1x32xf32> to vector<2x128x32xf32>
    %13 = arith.addf %10, %12 : vector<2x128x32xf32>
    %14 = math.tanh %13 : vector<2x128x32xf32>
    %c0_11 = arith.constant 0 : index
    %c0_12 = arith.constant 0 : index
    %15 = vector.load %arg7[%c0_11, %c0_12] : memref<1x32xf32, #tpu.memory_space<vmem>>, vector<1x32xf32>
    %16 = vector.shape_cast %15 : vector<1x32xf32> to vector<1x1x32xf32>
    %17 = vector.broadcast %16 : vector<1x1x32xf32> to vector<2x128x32xf32>
    %18 = arith.mulf %14, %17 : vector<2x128x32xf32>
    %cst_13 = arith.constant dense<0.000000e+00> : vector<2x128xf32>
    %19 = vector.multi_reduction <add>, %18, %cst_13 [2] : vector<2x128x32xf32> to vector<2x128xf32>
    %c128_i32 = arith.constant 128 : i32
    %20 = arith.muli %arg1, %c128_i32 : i32
    %21 = tpu.assume_multiple %20, 128 : i32
    %c0_14 = arith.constant 0 : index
    %22 = arith.index_cast %21 : i32 to index
    %23 = vector.load %arg9[%c0_14, %22] : memref<2x128xf32, #tpu.memory_space<vmem>>, vector<2x128xf32>
    tpu.vector_store %arg9[%c0_14, %22], %19 {strides = array<i32>} : memref<2x128xf32, #tpu.memory_space<vmem>>, vector<2x128xf32>,
    %c0_i32 = arith.constant 0 : i32
    %24 = arith.cmpi eq, %arg1, %c0_i32 : i32
    %25 = arith.extui %24 : i1 to i32
    %c0_i32_15 = arith.constant 0 : i32
    %26 = arith.cmpi ne, %25, %c0_i32_15 : i32
    scf.if %26 {
      %c0_16 = arith.constant 0 : index
      %c0_17 = arith.constant 0 : index
      %27 = vector.load %arg9[%c0_16, %c0_17] : memref<2x128xf32, #tpu.memory_space<vmem>>, vector<2x128xf32>
      %28 = tpu.iota {dimensions = array<i32: 1>} : vector<2x128xi32>
      %c8_i32 = arith.constant 8 : i32
      %29 = vector.broadcast %c8_i32 : i32 to vector<2x128xi32>
      %30 = arith.cmpi slt, %28, %29 : vector<2x128xi32>
      %cst_18 = arith.constant 0xFF800000 : f32
      %31 = vector.broadcast %cst_18 : f32 to vector<2x128xf32>
      %32 = arith.select %30, %27, %31 : vector<2x128xi1>, vector<2x128xf32>
      %cst_19 = arith.constant dense<0xFF800000> : vector<2xf32>
      %33 = vector.multi_reduction <maximumf>, %32, %cst_19 [1] : vector<2x128xf32> to vector<2xf32>
      %34 = vector.shape_cast %33 : vector<2xf32> to vector<2x1xf32>
      %35 = vector.broadcast %34 : vector<2x1xf32> to vector<2x128xf32>
      %36 = arith.subf %32, %35 : vector<2x128xf32>
      %37 = math.exp %36 : vector<2x128xf32>
      %cst_20 = arith.constant dense<0.000000e+00> : vector<2xf32>
      %38 = vector.multi_reduction <add>, %37, %cst_20 [1] : vector<2x128xf32> to vector<2xf32>
      %39 = vector.shape_cast %38 : vector<2xf32> to vector<2x1xf32>
      %cst_21 = arith.constant 1.000000e+00 : f32
      %40 = vector.broadcast %cst_21 : f32 to vector<2x1xf32>
      %41 = arith.divf %40, %39 : vector<2x1xf32>
      %42 = vector.broadcast %41 : vector<2x1xf32> to vector<2x128xf32>
      %43 = arith.mulf %37, %42 : vector<2x128xf32>
      %c0_22 = arith.constant 0 : index
      %c0_23 = arith.constant 0 : index
      %44 = vector.load %arg8[%c0_22, %c0_23] : memref<2x128xf32, #tpu.memory_space<vmem>>, vector<2x128xf32>
      tpu.vector_store %arg8[%c0_22, %c0_23], %43 {strides = array<i32>} : memref<2x128xf32, #tpu.memory_space<vmem>>, vector<2x128xf32>,
    } else {
    }
    return
  }
  func.func @transform_0(%arg0: i32, %arg1: i32) -> (i32, i32) {
    %c0_i32 = arith.constant 0 : i32
    %c0_i32_0 = arith.constant 0 : i32
    return %arg0, %c0_i32 : i32, i32
  }
  func.func @transform_1(%arg0: i32, %arg1: i32) -> (i32, i32, i32) {
    %c0_i32 = arith.constant 0 : i32
    %c0_i32_0 = arith.constant 0 : i32
    return %arg0, %arg1, %c0_i32 : i32, i32, i32
  }
  func.func @transform_2(%arg0: i32, %arg1: i32) -> (i32, i32) {
    %c0_i32 = arith.constant 0 : i32
    %c0_i32_0 = arith.constant 0 : i32
    %c0_i32_1 = arith.constant 0 : i32
    return %c0_i32, %c0_i32_0 : i32, i32
  }
  func.func @transform_3(%arg0: i32, %arg1: i32) -> (i32, i32) {
    %c0_i32 = arith.constant 0 : i32
    %c0_i32_0 = arith.constant 0 : i32
    %c0_i32_1 = arith.constant 0 : i32
    return %c0_i32, %c0_i32_0 : i32, i32
  }
  func.func @transform_4(%arg0: i32, %arg1: i32) -> (i32, i32) {
    %c0_i32 = arith.constant 0 : i32
    %c0_i32_0 = arith.constant 0 : i32
    %c0_i32_1 = arith.constant 0 : i32
    return %c0_i32, %c0_i32_0 : i32, i32
  }
  func.func @transform_5(%arg0: i32, %arg1: i32) -> (i32, i32) {
    %c0_i32 = arith.constant 0 : i32
    %c0_i32_0 = arith.constant 0 : i32
    %c0_i32_1 = arith.constant 0 : i32
    return %c0_i32, %c0_i32_0 : i32, i32
  }
  func.func @transform_6(%arg0: i32, %arg1: i32) -> (i32, i32) {
    %c0_i32 = arith.constant 0 : i32
    %c0_i32_0 = arith.constant 0 : i32
    return %arg0, %c0_i32 : i32, i32
  }
}

</mosaic_0001>

<llo_original>
// kernel: tpu_custom_call.1
$region0: #{tpu_custom_call.1}
  #allocation0 [shape = 'u32[]', space=smem, size = 0x4, offset = 0x4, fixed_abs, tag = 'smem constant byte address 0x4 - core index']
  #allocation1 [shape = 'u32[72,128]{1,0:T(1,128)}', space=vmem, size = 0x9000, scoped, tag = 'internal scratch']
  #allocation2 [shape = 'f32[2,128]{1,0:T(2,128)}', space=vmem, size = 0x400, scoped, tag = 'scratch operand']
  %s0 = inlined_call_operand.vmem [shape: f32[2,32], index: 0, kind: input, shape index: {}]
  %s1 = inlined_call_operand.vmem [shape: f32[2,128,32], index: 1, kind: input, shape index: {}]
  %s2 = inlined_call_operand.vmem [shape: f32[32,32], index: 2, kind: input, shape index: {}]
  %s3 = inlined_call_operand.vmem [shape: f32[32,32], index: 3, kind: input, shape index: {}]
  %s4 = inlined_call_operand.vmem [shape: f32[1,32], index: 4, kind: input, shape index: {}]
  %s5 = inlined_call_operand.vmem [shape: f32[1,32], index: 5, kind: input, shape index: {}]
  %s6 = inlined_call_operand.hbm [shape: f32[2,128], index: 6, kind: output, shape index: {}]
  %s7 = sld [smem:[#allocation0]]
  $region38: #{tpu_custom_call.1} parent=0
    _
  %s9 = ssub.s32 1, %s7
  %s10 = scalar_select 0, %s9, %s7
  $region1: #{tpu_custom_call.1} parent=0
    #allocation3 [shape = 'u8[1024]{0}', space=vmem, size = 0x400, scoped, tag = 'output window, operand 0, single buffered']
    #allocation4 [shape = 's32[1]{0}', space=sflag, size = 0x4, scoped, tag = 'scoped memory for tpu_custom_call.1']
    %11 = vsyncpa [#allocation4], 0
    // Predicated region
    $region2: #{tpu_custom_call.1} parent=1 // pred_check
      _
    $region3: #{tpu_custom_call.1} parent=1 // pred_check_branch
      %13 = sbr.rel (0) target = $region5
    $region4: #{tpu_custom_call.1} parent=1 // pred_region
      _
    $region5: #{tpu_custom_call.1} parent=1 // pred_fallthru
      _
    // Predicated region
    $region6: #{tpu_custom_call.1} parent=1 // pred_check
      _
    $region7: #{tpu_custom_call.1} parent=1 // pred_check_branch
      %15 = sbr.rel (0) target = $region9
    $region8: #{tpu_custom_call.1} parent=1 // pred_region
      _
    $region9: #{tpu_custom_call.1} parent=1 // pred_fallthru
      _
    // Predicated region
    $region10: #{tpu_custom_call.1} parent=1 // pred_check
      _
    $region11: #{tpu_custom_call.1} parent=1 // pred_check_branch
      %17 = sbr.rel (0) target = $region13
    $region12: #{tpu_custom_call.1} parent=1 // pred_region
      _
    $region13: #{tpu_custom_call.1} parent=1 // pred_fallthru
      _
    // Predicated region
    $region14: #{tpu_custom_call.1} parent=1 // pred_check
      _
    $region15: #{tpu_custom_call.1} parent=1 // pred_check_branch
      %19 = sbr.rel (0) target = $region17
    $region16: #{tpu_custom_call.1} parent=1 // pred_region
      _
    $region17: #{tpu_custom_call.1} parent=1 // pred_fallthru
      _
    // Predicated region
    $region18: #{tpu_custom_call.1} parent=1 // pred_check
      _
    $region19: #{tpu_custom_call.1} parent=1 // pred_check_branch
      %21 = sbr.rel (0) target = $region21
    $region20: #{tpu_custom_call.1} parent=1 // pred_region
      _
    $region21: #{tpu_custom_call.1} parent=1 // pred_fallthru
      _
    // Predicated region
    $region22: #{tpu_custom_call.1} parent=1 // pred_check
      _
    $region23: #{tpu_custom_call.1} parent=1 // pred_check_branch
      %23 = sbr.rel (0) target = $region25
    $region24: #{tpu_custom_call.1} parent=1 // pred_region
      _
    $region25: #{tpu_custom_call.1} parent=1 // pred_fallthru
      _
    %v24 = vld [vmem:[%s0] sm:$0x3]
    %v25 = vld [vmem:[%s2] sm:$0xff]
    %v26 = vld [vmem:[%s2 + $0x8] sm:$0xff]
    %v27 = vld [vmem:[%s2 + $0x10] sm:$0xff]
    %v28 = vld [vmem:[%s2 + $0x18] sm:$0xff]
    %v29 = vld [vmem:[%s4] sm:$0x1]
    %v31 = vperm.slane %v29, 0
    %vm33 = vcmask 261120
    %v35 = vsel %vm33, %v24, 0
    %37 = vmatpush.msra.mxu0 0.0
    %38 = vmatpush.msra.mxu0 0.0
    %39 = vmatpush.msra.mxu0 0.0
    %40 = vmatpush.msra.mxu0 0.0
    %41 = vmatpush.msra.mxu0 0.0
    %42 = vmatpush.msra.mxu0 0.0
    %43 = vmatpush.msra.mxu0 0.0
    %44 = vmatpush.msra.mxu0 0.0
    %45 = vmatpush.msra.mxu0 0.0
    %46 = vmatpush.msra.mxu0 0.0
    %47 = vmatpush.msra.mxu0 0.0
    %48 = vmatpush.msra.mxu0 0.0
    %49 = vmatpush.msra.mxu0 %v28
    %50 = vmatpush.msra.mxu0 %v27
    %51 = vmatpush.msra.mxu0 %v26
    %52 = vmatpush.msra.mxu0 %v25
    %53 = vmatmul.f32.gmra.mxu0 %v35
    %v54 = vpop.f32.mrf.mxu0
    %v55 = vadd.f32 %v31, %v54
    %56 = vdwg.mxu0
    %v57 = vld [vmem:[%s1] sm:$0xff]
    %v58 = vld [vmem:[%s1 + $0x8] sm:$0xff]
    %v59 = vld [vmem:[%s1 + $0x10] sm:$0xff]
    %v60 = vld [vmem:[%s1 + $0x18] sm:$0xff]
    %v61 = vld [vmem:[%s1 + $0x20] sm:$0xff]
    %v62 = vld [vmem:[%s1 + $0x28] sm:$0xff]
    %v63 = vld [vmem:[%s1 + $0x30] sm:$0xff]
    %v64 = vld [vmem:[%s1 + $0x38] sm:$0xff]
    %v65 = vld [vmem:[%s1 + $0x40] sm:$0xff]
    %v66 = vld [vmem:[%s1 + $0x48] sm:$0xff]
    %v67 = vld [vmem:[%s1 + $0x50] sm:$0xff]
    %v68 = vld [vmem:[%s1 + $0x58] sm:$0xff]
    %v69 = vld [vmem:[%s1 + $0x60] sm:$0xff]
    %v70 = vld [vmem:[%s1 + $0x68] sm:$0xff]
    %v71 = vld [vmem:[%s1 + $0x70] sm:$0xff]
    %v72 = vld [vmem:[%s1 + $0x78] sm:$0xff]
    %v73 = vld [vmem:[%s1 + $0x80] sm:$0xff]
    %v74 = vld [vmem:[%s1 + $0x88] sm:$0xff]
    %v75 = vld [vmem:[%s1 + $0x90] sm:$0xff]
    %v76 = vld [vmem:[%s1 + $0x98] sm:$0xff]
    %v77 = vld [vmem:[%s1 + $0xa0] sm:$0xff]
    %v78 = vld [vmem:[%s1 + $0xa8] sm:$0xff]
    %v79 = vld [vmem:[%s1 + $0xb0] sm:$0xff]
    %v80 = vld [vmem:[%s1 + $0xb8] sm:$0xff]
    %v81 = vld [vmem:[%s1 + $0xc0] sm:$0xff]
    %v82 = vld [vmem:[%s1 + $0xc8] sm:$0xff]
    %v83 = vld [vmem:[%s1 + $0xd0] sm:$0xff]
    %v84 = vld [vmem:[%s1 + $0xd8] sm:$0xff]
    %v85 = vld [vmem:[%s1 + $0xe0] sm:$0xff]
    %v86 = vld [vmem:[%s1 + $0xe8] sm:$0xff]
    %v87 = vld [vmem:[%s1 + $0xf0] sm:$0xff]
    %v88 = vld [vmem:[%s1 + $0xf8] sm:$0xff]
    %v89 = vld [vmem:[%s3] sm:$0xff]
    %v90 = vld [vmem:[%s3 + $0x8] sm:$0xff]
    %v91 = vld [vmem:[%s3 + $0x10] sm:$0xff]
    %v92 = vld [vmem:[%s3 + $0x18] sm:$0xff]
    %v94 = vsel %vm33, %v57, 0
    %v97 = vsel %vm33, %v58, 0
    %v100 = vsel %vm33, %v59, 0
    %v103 = vsel %vm33, %v60, 0
    %v106 = vsel %vm33, %v61, 0
    %v109 = vsel %vm33, %v62, 0
    %v112 = vsel %vm33, %v63, 0
    %v115 = vsel %vm33, %v64, 0
    %v118 = vsel %vm33, %v65, 0
    %v121 = vsel %vm33, %v66, 0
    %v124 = vsel %vm33, %v67, 0
    %v127 = vsel %vm33, %v68, 0
    %v130 = vsel %vm33, %v69, 0
    %v133 = vsel %vm33, %v70, 0
    %v136 = vsel %vm33, %v71, 0
    %v139 = vsel %vm33, %v72, 0
    %v142 = vsel %vm33, %v73, 0
    %v145 = vsel %vm33, %v74, 0
    %v148 = vsel %vm33, %v75, 0
    %v151 = vsel %vm33, %v76, 0
    %v154 = vsel %vm33, %v77, 0
    %v157 = vsel %vm33, %v78, 0
    %v160 = vsel %vm33, %v79, 0
    %v163 = vsel %vm33, %v80, 0
    %v166 = vsel %vm33, %v81, 0
    %v169 = vsel %vm33, %v82, 0
    %v172 = vsel %vm33, %v83, 0
    %v175 = vsel %vm33, %v84, 0
    %v178 = vsel %vm33, %v85, 0
    %v181 = vsel %vm33, %v86, 0
    %v184 = vsel %vm33, %v87, 0
    %v187 = vsel %vm33, %v88, 0
    %189 = vmatpush.msra.mxu0 0.0
    %190 = vmatpush.msra.mxu0 0.0
    %191 = vmatpush.msra.mxu0 0.0
    %192 = vmatpush.msra.mxu0 0.0
    %193 = vmatpush.msra.mxu0 0.0
    %194 = vmatpush.msra.mxu0 0.0
    %195 = vmatpush.msra.mxu0 0.0
    %196 = vmatpush.msra.mxu0 0.0
    %197 = vmatpush.msra.mxu0 0.0
    %198 = vmatpush.msra.mxu0 0.0
    %199 = vmatpush.msra.mxu0 0.0
    %200 = vmatpush.msra.mxu0 0.0
    %201 = vmatpush.msra.mxu0 %v92
    %202 = vmatpush.msra.mxu0 %v91
    %203 = vmatpush.msra.mxu0 %v90
    %204 = vmatpush.msra.mxu0 %v89
    %205 = vmatmul.f32.gmra.mxu0 %v94
    %v206 = vpop.f32.mrf.mxu0
    %v207 = vadd.f32 0.0, %v206
    %208 = vmatmul.f32.gmra.mxu0 %v97
    %v209 = vpop.f32.mrf.mxu0
    %v210 = vadd.f32 0.0, %v209
    %211 = vmatmul.f32.gmra.mxu0 %v100
    %v212 = vpop.f32.mrf.mxu0
    %v213 = vadd.f32 0.0, %v212
    %214 = vmatmul.f32.gmra.mxu0 %v103
    %v215 = vpop.f32.mrf.mxu0
    %v216 = vadd.f32 0.0, %v215
    %217 = vmatmul.f32.gmra.mxu0 %v106
    %v218 = vpop.f32.mrf.mxu0
    %v219 = vadd.f32 0.0, %v218
    %220 = vmatmul.f32.gmra.mxu0 %v109
    %v221 = vpop.f32.mrf.mxu0
    %v222 = vadd.f32 0.0, %v221
    %223 = vmatmul.f32.gmra.mxu0 %v112
    %v224 = vpop.f32.mrf.mxu0
    %v225 = vadd.f32 0.0, %v224
    %226 = vmatmul.f32.gmra.mxu0 %v115
    %v227 = vpop.f32.mrf.mxu0
    %v228 = vadd.f32 0.0, %v227
    %229 = vmatmul.f32.gmra.mxu0 %v118
    %v230 = vpop.f32.mrf.mxu0
    %v231 = vadd.f32 0.0, %v230
    %232 = vmatmul.f32.gmra.mxu0 %v121
    %v233 = vpop.f32.mrf.mxu0
    %v234 = vadd.f32 0.0, %v233
    %235 = vmatmul.f32.gmra.mxu0 %v124
    %v236 = vpop.f32.mrf.mxu0
    %v237 = vadd.f32 0.0, %v236
    %238 = vmatmul.f32.gmra.mxu0 %v127
    %v239 = vpop.f32.mrf.mxu0
    %v240 = vadd.f32 0.0, %v239
    %241 = vmatmul.f32.gmra.mxu0 %v130
    %v242 = vpop.f32.mrf.mxu0
    %v243 = vadd.f32 0.0, %v242
    %244 = vmatmul.f32.gmra.mxu0 %v133
    %v245 = vpop.f32.mrf.mxu0
    %v246 = vadd.f32 0.0, %v245
    %247 = vmatmul.f32.gmra.mxu0 %v136
    %v248 = vpop.f32.mrf.mxu0
    %v249 = vadd.f32 0.0, %v248
    %250 = vmatmul.f32.gmra.mxu0 %v139
    %v251 = vpop.f32.mrf.mxu0
    %v252 = vadd.f32 0.0, %v251
    %253 = vmatmul.f32.gmra.mxu0 %v142
    %v254 = vpop.f32.mrf.mxu0
    %v255 = vadd.f32 0.0, %v254
    %256 = vmatmul.f32.gmra.mxu0 %v145
    %v257 = vpop.f32.mrf.mxu0
    %v258 = vadd.f32 0.0, %v257
    %259 = vmatmul.f32.gmra.mxu0 %v148
    %v260 = vpop.f32.mrf.mxu0
    %v261 = vadd.f32 0.0, %v260
    %262 = vmatmul.f32.gmra.mxu0 %v151
    %v263 = vpop.f32.mrf.mxu0
    %v264 = vadd.f32 0.0, %v263
    %265 = vmatmul.f32.gmra.mxu0 %v154
    %v266 = vpop.f32.mrf.mxu0
    %v267 = vadd.f32 0.0, %v266
    %268 = vmatmul.f32.gmra.mxu0 %v157
    %v269 = vpop.f32.mrf.mxu0
    %v270 = vadd.f32 0.0, %v269
    %271 = vmatmul.f32.gmra.mxu0 %v160
    %v272 = vpop.f32.mrf.mxu0
    %v273 = vadd.f32 0.0, %v272
    %274 = vmatmul.f32.gmra.mxu0 %v163
    %v275 = vpop.f32.mrf.mxu0
    %v276 = vadd.f32 0.0, %v275
    %277 = vmatmul.f32.gmra.mxu0 %v166
    %v278 = vpop.f32.mrf.mxu0
    %v279 = vadd.f32 0.0, %v278
    %280 = vmatmul.f32.gmra.mxu0 %v169
    %v281 = vpop.f32.mrf.mxu0
    %v282 = vadd.f32 0.0, %v281
    %283 = vmatmul.f32.gmra.mxu0 %v172
    %v284 = vpop.f32.mrf.mxu0
    %v285 = vadd.f32 0.0, %v284
    %286 = vmatmul.f32.gmra.mxu0 %v175
    %v287 = vpop.f32.mrf.mxu0
    %v288 = vadd.f32 0.0, %v287
    %289 = vmatmul.f32.gmra.mxu0 %v178
    %v290 = vpop.f32.mrf.mxu0
    %v291 = vadd.f32 0.0, %v290
    %292 = vmatmul.f32.gmra.mxu0 %v181
    %v293 = vpop.f32.mrf.mxu0
    %v294 = vadd.f32 0.0, %v293
    %295 = vmatmul.f32.gmra.mxu0 %v184
    %v296 = vpop.f32.mrf.mxu0
    %v297 = vadd.f32 0.0, %v296
    %298 = vmatmul.f32.gmra.mxu0 %v187
    %v299 = vpop.f32.mrf.mxu0
    %v300 = vadd.f32 0.0, %v299
    %301 = vdwg.mxu0
    %v303 = vrot.slane %v55, 1
    %v304 = vperm.slane %v55, 0
    %v305 = vperm.slane %v303, 0
    %v308 = vadd.f32 %v207, %v304
    %v309 = vadd.f32 %v210, %v304
    %v310 = vadd.f32 %v213, %v304
    %v311 = vadd.f32 %v216, %v304
    %v312 = vadd.f32 %v219, %v304
    %v313 = vadd.f32 %v222, %v304
    %v314 = vadd.f32 %v225, %v304
    %v315 = vadd.f32 %v228, %v304
    %v316 = vadd.f32 %v231, %v304
    %v317 = vadd.f32 %v234, %v304
    %v318 = vadd.f32 %v237, %v304
    %v319 = vadd.f32 %v240, %v304
    %v320 = vadd.f32 %v243, %v304
    %v321 = vadd.f32 %v246, %v304
    %v322 = vadd.f32 %v249, %v304
    %v323 = vadd.f32 %v252, %v304
    %v324 = vadd.f32 %v255, %v305
    %v325 = vadd.f32 %v258, %v305
    %v326 = vadd.f32 %v261, %v305
    %v327 = vadd.f32 %v264, %v305
    %v328 = vadd.f32 %v267, %v305
    %v329 = vadd.f32 %v270, %v305
    %v330 = vadd.f32 %v273, %v305
    %v331 = vadd.f32 %v276, %v305
    %v332 = vadd.f32 %v279, %v305
    %v333 = vadd.f32 %v282, %v305
    %v334 = vadd.f32 %v285, %v305
    %v335 = vadd.f32 %v288, %v305
    %v336 = vadd.f32 %v291, %v305
    %v337 = vadd.f32 %v294, %v305
    %v338 = vadd.f32 %v297, %v305
    %v339 = vadd.f32 %v300, %v305
    %v340 = vtanh.pop %v308
    %v341 = vtanh.pop %v309
    %v342 = vtanh.pop %v310
    %v343 = vtanh.pop %v311
    %v344 = vtanh.pop %v312
    %v345 = vtanh.pop %v313
    %v346 = vtanh.pop %v314
    %v347 = vtanh.pop %v315
    %v348 = vtanh.pop %v316
    %v349 = vtanh.pop %v317
    %v350 = vtanh.pop %v318
    %v351 = vtanh.pop %v319
    %v352 = vtanh.pop %v320
    %v353 = vtanh.pop %v321
    %v354 = vtanh.pop %v322
    %v355 = vtanh.pop %v323
    %v356 = vtanh.pop %v324
    %v357 = vtanh.pop %v325
    %v358 = vtanh.pop %v326
    %v359 = vtanh.pop %v327
    %v360 = vtanh.pop %v328
    %v361 = vtanh.pop %v329
    %v362 = vtanh.pop %v330
    %v363 = vtanh.pop %v331
    %v364 = vtanh.pop %v332
    %v365 = vtanh.pop %v333
    %v366 = vtanh.pop %v334
    %v367 = vtanh.pop %v335
    %v368 = vtanh.pop %v336
    %v369 = vtanh.pop %v337
    %v370 = vtanh.pop %v338
    %v371 = vtanh.pop %v339
    %v372 = vld [vmem:[%s5] sm:$0x1]
    %v374 = vperm.slane %v372, 0
    %v376 = vmul.f32 %v340, %v374
    %v377 = vmul.f32 %v341, %v374
    %v378 = vmul.f32 %v342, %v374
    %v379 = vmul.f32 %v343, %v374
    %v380 = vmul.f32 %v344, %v374
    %v381 = vmul.f32 %v345, %v374
    %v382 = vmul.f32 %v346, %v374
    %v383 = vmul.f32 %v347, %v374
    %v384 = vmul.f32 %v348, %v374
    %v385 = vmul.f32 %v349, %v374
    %v386 = vmul.f32 %v350, %v374
    %v387 = vmul.f32 %v351, %v374
    %v388 = vmul.f32 %v352, %v374
    %v389 = vmul.f32 %v353, %v374
    %v390 = vmul.f32 %v354, %v374
    %v391 = vmul.f32 %v355, %v374
    %v392 = vmul.f32 %v356, %v374
    %v393 = vmul.f32 %v357, %v374
    %v394 = vmul.f32 %v358, %v374
    %v395 = vmul.f32 %v359, %v374
    %v396 = vmul.f32 %v360, %v374
    %v397 = vmul.f32 %v361, %v374
    %v398 = vmul.f32 %v362, %v374
    %v399 = vmul.f32 %v363, %v374
    %v400 = vmul.f32 %v364, %v374
    %v401 = vmul.f32 %v365, %v374
    %v402 = vmul.f32 %v366, %v374
    %v403 = vmul.f32 %v367, %v374
    %v404 = vmul.f32 %v368, %v374
    %v405 = vmul.f32 %v369, %v374
    %v406 = vmul.f32 %v370, %v374
    %v407 = vmul.f32 %v371, %v374
    %v408 = vsel %vm33, %v376, 0.0
    %409 = vadd.xlane.f32.xlu0 %v408
    %v410 = vpop.xlane.xlu0 %409
    %v411 = vsel %vm33, %v377, 0.0
    %412 = vadd.xlane.f32.xlu0 %v411
    %v413 = vpop.xlane.xlu0 %412
    %v414 = vsel %vm33, %v378, 0.0
    %415 = vadd.xlane.f32.xlu0 %v414
    %v416 = vpop.xlane.xlu0 %415
    %v417 = vsel %vm33, %v379, 0.0
    %418 = vadd.xlane.f32.xlu0 %v417
    %v419 = vpop.xlane.xlu0 %418
    %v420 = vsel %vm33, %v380, 0.0
    %421 = vadd.xlane.f32.xlu0 %v420
    %v422 = vpop.xlane.xlu0 %421
    %v423 = vsel %vm33, %v381, 0.0
    %424 = vadd.xlane.f32.xlu0 %v423
    %v425 = vpop.xlane.xlu0 %424
    %v426 = vsel %vm33, %v382, 0.0
    %427 = vadd.xlane.f32.xlu0 %v426
    %v428 = vpop.xlane.xlu0 %427
    %v429 = vsel %vm33, %v383, 0.0
    %430 = vadd.xlane.f32.xlu0 %v429
    %v431 = vpop.xlane.xlu0 %430
    %v432 = vsel %vm33, %v384, 0.0
    %433 = vadd.xlane.f32.xlu0 %v432
    %v434 = vpop.xlane.xlu0 %433
    %v435 = vsel %vm33, %v385, 0.0
    %436 = vadd.xlane.f32.xlu0 %v435
    %v437 = vpop.xlane.xlu0 %436
    %v438 = vsel %vm33, %v386, 0.0
    %439 = vadd.xlane.f32.xlu0 %v438
    %v440 = vpop.xlane.xlu0 %439
    %v441 = vsel %vm33, %v387, 0.0
    %442 = vadd.xlane.f32.xlu0 %v441
    %v443 = vpop.xlane.xlu0 %442
    %v444 = vsel %vm33, %v388, 0.0
    %445 = vadd.xlane.f32.xlu0 %v444
    %v446 = vpop.xlane.xlu0 %445
    %v447 = vsel %vm33, %v389, 0.0
    %448 = vadd.xlane.f32.xlu0 %v447
    %v449 = vpop.xlane.xlu0 %448
    %v450 = vsel %vm33, %v390, 0.0
    %451 = vadd.xlane.f32.xlu0 %v450
    %v452 = vpop.xlane.xlu0 %451
    %v453 = vsel %vm33, %v391, 0.0
    %454 = vadd.xlane.f32.xlu0 %v453
    %v455 = vpop.xlane.xlu0 %454
    %v456 = vsel %vm33, %v392, 0.0
    %457 = vadd.xlane.f32.xlu0 %v456
    %v458 = vpop.xlane.xlu0 %457
    %v459 = vsel %vm33, %v393, 0.0
    %460 = vadd.xlane.f32.xlu0 %v459
    %v461 = vpop.xlane.xlu0 %460
    %v462 = vsel %vm33, %v394, 0.0
    %463 = vadd.xlane.f32.xlu0 %v462
    %v464 = vpop.xlane.xlu0 %463
    %v465 = vsel %vm33, %v395, 0.0
    %466 = vadd.xlane.f32.xlu0 %v465
    %v467 = vpop.xlane.xlu0 %466
    %v468 = vsel %vm33, %v396, 0.0
    %469 = vadd.xlane.f32.xlu0 %v468
    %v470 = vpop.xlane.xlu0 %469
    %v471 = vsel %vm33, %v397, 0.0
    %472 = vadd.xlane.f32.xlu0 %v471
    %v473 = vpop.xlane.xlu0 %472
    %v474 = vsel %vm33, %v398, 0.0
    %475 = vadd.xlane.f32.xlu0 %v474
    %v476 = vpop.xlane.xlu0 %475
    %v477 = vsel %vm33, %v399, 0.0
    %478 = vadd.xlane.f32.xlu0 %v477
    %v479 = vpop.xlane.xlu0 %478
    %v480 = vsel %vm33, %v400, 0.0
    %481 = vadd.xlane.f32.xlu0 %v480
    %v482 = vpop.xlane.xlu0 %481
    %v483 = vsel %vm33, %v401, 0.0
    %484 = vadd.xlane.f32.xlu0 %v483
    %v485 = vpop.xlane.xlu0 %484
    %v486 = vsel %vm33, %v402, 0.0
    %487 = vadd.xlane.f32.xlu0 %v486
    %v488 = vpop.xlane.xlu0 %487
    %v489 = vsel %vm33, %v403, 0.0
    %490 = vadd.xlane.f32.xlu0 %v489
    %v491 = vpop.xlane.xlu0 %490
    %v492 = vsel %vm33, %v404, 0.0
    %493 = vadd.xlane.f32.xlu0 %v492
    %v494 = vpop.xlane.xlu0 %493
    %v495 = vsel %vm33, %v405, 0.0
    %496 = vadd.xlane.f32.xlu0 %v495
    %v497 = vpop.xlane.xlu0 %496
    %v498 = vsel %vm33, %v406, 0.0
    %499 = vadd.xlane.f32.xlu0 %v498
    %v500 = vpop.xlane.xlu0 %499
    %v501 = vsel %vm33, %v407, 0.0
    %502 = vadd.xlane.f32.xlu0 %v501
    %v503 = vpop.xlane.xlu0 %502
    %s504 = smul.u32 0, 128
    %v537 = vlaneseq
    %v538 = vand.u32 %v537, 127
    %v539 = vperm.slane %v410, %v538
    %v540 = vadd.s32 %v538, 4294967288
    %v541 = vperm.slane %v413, %v540
    %vm542 = vcmask 130112
    %v543 = vsel %vm542, %v541, %v539
    %v544 = vadd.s32 %v538, 4294967280
    %v545 = vperm.slane %v416, %v544
    %vm546 = vcmask 195712
    %v547 = vsel %vm546, %v545, %v543
    %v548 = vadd.s32 %v538, 4294967272
    %v549 = vperm.slane %v419, %v548
    %vm550 = vcmask 261312
    %v551 = vsel %vm550, %v549, %v547
    %v552 = vadd.s32 %v538, 4294967264
    %v553 = vperm.slane %v422, %v552
    %vm554 = vcmask 326912
    %v555 = vsel %vm554, %v553, %v551
    %v556 = vadd.s32 %v538, 4294967256
    %v557 = vperm.slane %v425, %v556
    %vm558 = vcmask 392512
    %v559 = vsel %vm558, %v557, %v555
    %v560 = vadd.s32 %v538, 4294967248
    %v561 = vperm.slane %v428, %v560
    %vm562 = vcmask 458112
    %v563 = vsel %vm562, %v561, %v559
    %v564 = vadd.s32 %v538, 4294967240
    %v565 = vperm.slane %v431, %v564
    %vm566 = vcmask 523712
    %v567 = vsel %vm566, %v565, %v563
    %v568 = vadd.s32 %v538, 4294967232
    %v569 = vperm.slane %v434, %v568
    %vm570 = vcmask 589312
    %v571 = vsel %vm570, %v569, %v567
    %v572 = vadd.s32 %v538, 4294967224
    %v573 = vperm.slane %v437, %v572
    %vm574 = vcmask 654912
    %v575 = vsel %vm574, %v573, %v571
    %v576 = vadd.s32 %v538, 4294967216
    %v577 = vperm.slane %v440, %v576
    %vm578 = vcmask 720512
    %v579 = vsel %vm578, %v577, %v575
    %v580 = vadd.s32 %v538, 4294967208
    %v581 = vperm.slane %v443, %v580
    %vm582 = vcmask 786112
    %v583 = vsel %vm582, %v581, %v579
    %v584 = vadd.s32 %v538, 4294967200
    %v585 = vperm.slane %v446, %v584
    %vm586 = vcmask 851712
    %v587 = vsel %vm586, %v585, %v583
    %v588 = vadd.s32 %v538, 4294967192
    %v589 = vperm.slane %v449, %v588
    %vm590 = vcmask 917312
    %v591 = vsel %vm590, %v589, %v587
    %v592 = vadd.s32 %v538, 4294967184
    %v593 = vperm.slane %v452, %v592
    %vm594 = vcmask 982912
    %v595 = vsel %vm594, %v593, %v591
    %v596 = vadd.s32 %v538, 4294967176
    %v597 = vperm.slane %v455, %v596
    %vm598 = vcmask 1048512
    %v599 = vsel %vm598, %v597, %v595
    %v600 = vperm.slane %v458, %v538
    %v601 = vperm.slane %v461, %v540
    %v602 = vsel %vm542, %v601, %v600
    %v603 = vperm.slane %v464, %v544
    %v604 = vsel %vm546, %v603, %v602
    %v605 = vperm.slane %v467, %v548
    %v606 = vsel %vm550, %v605, %v604
    %v607 = vperm.slane %v470, %v552
    %v608 = vsel %vm554, %v607, %v606
    %v609 = vperm.slane %v473, %v556
    %v610 = vsel %vm558, %v609, %v608
    %v611 = vperm.slane %v476, %v560
    %v612 = vsel %vm562, %v611, %v610
    %v613 = vperm.slane %v479, %v564
    %v614 = vsel %vm566, %v613, %v612
    %v615 = vperm.slane %v482, %v568
    %v616 = vsel %vm570, %v615, %v614
    %v617 = vperm.slane %v485, %v572
    %v618 = vsel %vm574, %v617, %v616
    %v619 = vperm.slane %v488, %v576
    %v620 = vsel %vm578, %v619, %v618
    %v621 = vperm.slane %v491, %v580
    %v622 = vsel %vm582, %v621, %v620
    %v623 = vperm.slane %v494, %v584
    %v624 = vsel %vm586, %v623, %v622
    %v625 = vperm.slane %v497, %v588
    %v626 = vsel %vm590, %v625, %v624
    %v627 = vperm.slane %v500, %v592
    %v628 = vsel %vm594, %v627, %v626
    %v629 = vperm.slane %v503, %v596
    %v630 = vsel %vm598, %v629, %v628
    %vm631 = vcmask 1041409
    %v632 = vsel %vm631, %v630, %v599
    %s634 = sshra.s32 %s504, 7
    %s635 = sand.u32 %s504, 127
    %s636 = scalar_lea.vmem [#allocation2], %s634
    %637 = vst [vmem:[%s636] sm:$0x3] %v632
    %p638 = scmp.eq.s32.totalorder 0, 0
    // Predicated region
    $region26: #{tpu_custom_call.1} parent=1 // pred_check
      %p639 = pneg %p638
    $region27: #{tpu_custom_call.1} parent=1 // pred_check_branch
      %641 = sbr.rel (%p639) target = $region29
    $region28: #{tpu_custom_call.1} parent=1 // pred_region
      %v642 = vld [vmem:[#allocation2] sm:$0x3]
      %vm643 = vcmp.lt.s32.totalorder %v538, 8
      %v644 = vsel %vm643, %v642, -inf
      %vm645 = vcmask 1041408
      %v646 = vsel %vm645, %v644, -inf
      %647 = vmax.xlane.f32.xlu0 %v646
      %v648 = vpop.xlane.xlu0 %647
      %v649 = vsub.f32 %v644, %v648
      %v650 = vmul.f32 %v649, 1.442695
      %v651 = vpow.pop %v650
      %v652 = vsel %vm645, %v651, 0.0
      %653 = vadd.xlane.f32.xlu0 %v652
      %v654 = vpop.xlane.xlu0 %653
      %v655 = vrcp.pop %v654
      %v656 = vmul.f32 %v654, %v655
      %v657 = vsub.f32 1.0, %v656
      %v658 = vmul.f32 %v655, %v657
      %v659 = vadd.f32 %v655, %v658
      %vm660 = vweird.f32 %v654
      %vm661 = vweird.f32 %v655
      %vm662 = vmor %vm660, %vm661
      %v663 = vsel %vm662, %v655, %v659
      %v664 = vand.u32 2147483647, %v654
      %vm665 = vcmp.eq.f32.partialorder %v664, 8.507059e+37
      %v666 = vand.u32 %v654, 2147483648
      %v667 = vor.u32 1.1754944e-38, %v666
      %v668 = vsel %vm665, %v667, %v663
      %v669 = vmul.f32 1.0, %v668
      %v670 = vmul.f32 %v651, %v669
      %671 = vst [vmem:[#allocation3] sm:$0x3] %v670
    $region29: #{tpu_custom_call.1} parent=1 // pred_fallthru
      _
    // Predicated region
    $region30: #{tpu_custom_call.1} parent=1 // pred_check
      _
    $region31: #{tpu_custom_call.1} parent=1 // pred_check_branch
      %673 = sbr.rel (0) target = $region33
    $region32: #{tpu_custom_call.1} parent=1 // pred_region
      %675 = vsyncadd [#allocation4], 0
      %s677 = sshll.u32 [#allocation3], 4
      %s678 = int_to_ptr.vmem [resolvable:$true] %s677
      %s679 = sshll.u32 %s6, 4
      %s680 = int_to_ptr.hbm [resolvable:$true] %s679
      %682 = dma.vmem_to_hbm [thread:$0]  %s678, 32, %s680, [#allocation4]
    $region33: #{tpu_custom_call.1} parent=1 // pred_fallthru
      _
    // Predicated region
    $region34: #{tpu_custom_call.1} parent=1 // pred_check
      _
    $region35: #{tpu_custom_call.1} parent=1 // pred_check_branch
      %684 = sbr.rel (0) target = $region37
    $region36: #{tpu_custom_call.1} parent=1 // pred_region
      %686 = dma.done [#allocation4], 32
    $region37: #{tpu_custom_call.1} parent=1 // pred_fallthru
      _
    %687 = vsyncpa [#allocation4], 1

</llo_original>
